<compile_context>
chip_gen: v5e
topology: v5e:2x2
jax: 0.10.0
libtpu: 0.0.40
codegen_flags: <defaults>
</compile_context>

<pallas_src>
import functools
import math

import jax
import jax.numpy as jnp
from jax import lax
from jax.experimental import pallas as pl
from jax.experimental.pallas import tpu as pltpu


def _mha_core_kernel(*refs, n_groups, G, d_k, has_mask, write_attn, wo_full,
                     compute_dtype, approx_recip):
    """One (batch, query-tile, head-group) grid step.

    refs (in order):
      q_ref    : (1, 1, TQ, G*d_k)   pre-projected, pre-scaled Q slice
      k_ref    : (1, 1, S,  G*d_k)   pre-projected K slice
      v_ref    : (1, 1, S,  G*d_k)   pre-projected V slice
      mask_ref : (1, TQ, S) f32      additive mask        (only if has_mask)
      wot_ref  : (D, D) or (G*d_k, D)  W_o^T (full/resident or per-group rows)
      out_ref  : (1, TQ, D) f32      output block (same block for every group)
      attn_ref : (1, G, TQ, S)       attention weights    (only if write_attn)
      acc_ref  : (TQ, D) f32         VMEM scratch accumulator
    """
    it = iter(refs)
    q_ref = next(it)
    k_ref = next(it)
    v_ref = next(it)
    mask_ref = next(it) if has_mask else None
    wot_ref = next(it)
    out_ref = next(it)
    attn_ref = next(it) if write_attn else None
    acc_ref = next(it)

    g = pl.program_id(2)
    gdk = G * d_k

    @pl.when(g == 0)
    def _init():
        acc_ref[...] = jnp.zeros_like(acc_ref)

    q_g = q_ref[0, 0]   # (TQ, G*d_k)  compute_dtype
    k_g = k_ref[0, 0]   # (S,  G*d_k)
    v_g = v_ref[0, 0]   # (S,  G*d_k)

    # Rows of W_o^T for this head group.
    if wo_full:
        if n_groups == 1:
            w_rows = wot_ref[...]                                   # (D, D) == (gdk, D)
        else:
            w_rows = wot_ref[pl.ds(pl.multiple_of(g * gdk, gdk), gdk), :]
    else:
        w_rows = wot_ref[...]                                       # (gdk, D)

    # Contract over the last dim of both operands (no transposes on the MXU path).
    dn = (((1,), (1,)), ((), ()))

    ctx_parts = []
    for h in range(G):                     # static, small unroll over heads in group
        lo, hi = h * d_k, (h + 1) * d_k
        q_h = q_g[:, lo:hi]                # (TQ, d_k)
        k_h = k_g[:, lo:hi]                # (S,  d_k)
        v_h = v_g[:, lo:hi]                # (S,  d_k)

        # Scores (scale already folded into W_q), f32 accumulation.
        s = lax.dot_general(q_h, k_h, dn, preferred_element_type=jnp.float32)
        if has_mask:
            s = s + mask_ref[0]

        # Numerically stable softmax, kept entirely in f32 (v5e-safe).
        m = jnp.max(s, axis=-1, keepdims=True)
        p = jnp.exp(s - m)
        denom = jnp.sum(p, axis=-1, keepdims=True)
        attn = p * pl.reciprocal(denom, approx=approx_recip)

        if write_attn:
            attn_ref[0, h] = attn.astype(attn_ref.dtype)

        ctx_h = jnp.dot(attn.astype(compute_dtype), v_h,
                        preferred_element_type=jnp.float32)         # (TQ, d_k)
        ctx_parts.append(ctx_h.astype(compute_dtype))

    # One grouped output-projection matmul (contracts over G*d_k -> full MXU depth),
    # accumulated into the VMEM-resident scratch.
    ctx = ctx_parts[0] if G == 1 else jnp.concatenate(ctx_parts, axis=-1)
    acc_ref[...] += jnp.dot(ctx, w_rows, preferred_element_type=jnp.float32)

    @pl.when(g == pl.num_programs(2) - 1)
    def _finalize():
        out_ref[0] = acc_ref[...].astype(out_ref.dtype)


def onnx_multihead_attention(query, key, value, wq, wk, wv, wo, n_heads,
                             attn_mask=None, *,
                             return_attn_weights=True,
                             attn_dtype=jnp.float32,
                             block_q=None,
                             heads_per_step=None,
                             mxu_depth=256,
                             compute_dtype=jnp.bfloat16,
                             approx_reciprocal=False,
                             vmem_limit_bytes=None,
                             wo_resident_bytes_limit=16 * 1024 * 1024):
    """Pallas forward of OnnxMultiheadAttention.

    query/key/value : [B, S, D] float32
    wq/wk/wv/wo     : [D, D] weights in PyTorch nn.Linear layout ([out, in])
    attn_mask       : None, (S, S), (1, S, S) or (B, S, S) additive mask
    Returns output [B, S, D] f32 (and attn_weights [B, H, S, S] if requested).
    """
    B, S, D = query.shape
    assert key.shape == (B, S, D) and value.shape == (B, S, D)
    assert D % n_heads == 0
    d_k = D // n_heads
    scale = 1.0 / math.sqrt(d_k)

    # ---- head grouping: fill the MXU contraction depth on the output projection.
    if heads_per_step is None:
        G = max(1, min(n_heads, mxu_depth // max(d_k, 1), max(1, 512 // max(d_k, 1))))
    else:
        G = max(1, min(n_heads, heads_per_step))
    while n_heads % G != 0:
        G -= 1
    n_groups = n_heads // G
    gdk = G * d_k

    # ---- query-tile size (capped at 512; full S for small sequences).
    if block_q is None:
        block_q = S
        for cand in (512, 256, 128):
            if S % cand == 0:
                block_q = cand
                break
        block_q = min(block_q, S)
    assert S % block_q == 0, "block_q must divide seq_len"
    n_q = S // block_q

    # ---- optional additive mask (specialized away when None).
    has_mask = attn_mask is not None
    mask = None
    mask_batched = False
    if has_mask:
        mask = jnp.asarray(attn_mask, jnp.float32)
        if mask.ndim == 2:
            mask = mask[None]
        assert mask.shape in ((1, S, S), (B, S, S)), \
            "attn_mask must broadcast to (B, S, S)"
        mask_batched = mask.shape[0] == B

    # ---- pre-project Q/K/V once (plain XLA matmuls), scale folded into W_q.
    f32 = jnp.float32
    q_proj = jnp.einsum("bsd,ed->bse", query.astype(f32), wq.astype(f32) * scale)
    k_proj = jnp.einsum("bsd,ed->bse", key.astype(f32), wk.astype(f32))
    v_proj = jnp.einsum("bsd,ed->bse", value.astype(f32), wv.astype(f32))

    def _group_layout(x):
        # (B, S, D) -> (B, n_groups, S, G*d_k): head-group axis leads, last two
        # block dims are full -> no (8,128) BlockSpec issues for any d_k.
        return x.reshape(B, S, n_groups, gdk).transpose(0, 2, 1, 3).astype(compute_dtype)

    q_p = _group_layout(q_proj)
    k_p = _group_layout(k_proj)
    v_p = _group_layout(v_proj)

    # W_o acts on the right of the concatenated context -> pre-transpose once.
    wot_c = jnp.transpose(wo).astype(compute_dtype)    # (D, D), rows = head columns
    cbytes = jnp.dtype(compute_dtype).itemsize
    wo_full = (n_groups == 1) or (D * D * cbytes <= wo_resident_bytes_limit)

    # ---- generation-aware VMEM budget.
    if vmem_limit_bytes is None:
        try:
            phys = int(pltpu.get_tpu_info().vmem_capacity_bytes)
            vmem_limit_bytes = min(int(phys * 0.85), 112 * 1024 * 1024)
        except Exception:
            vmem_limit_bytes = 64 * 1024 * 1024

    # ---- rough per-step footprint guard (double-buffered pipelined blocks).
    abytes = jnp.dtype(attn_dtype).itemsize
    footprint = 2 * (block_q * gdk + 2 * S * gdk) * cbytes          # q + k + v
    if has_mask:
        footprint += 2 * block_q * S * 4
    if return_attn_weights:
        footprint += 2 * G * block_q * S * abytes
    footprint += 2 * block_q * D * 4                                # out block
    footprint += (D * D if wo_full else 2 * gdk * D) * cbytes       # W_o^T
    footprint += block_q * D * 4                                    # acc scratch
    assert footprint <= vmem_limit_bytes, (
        f"estimated per-step VMEM {footprint} B exceeds budget {vmem_limit_bytes} B; "
        f"reduce block_q / heads_per_step or add a KV tile axis")

    # ---- specs / grid.
    grid = (B, n_q, n_groups)

    q_spec = pl.BlockSpec((1, 1, block_q, gdk), lambda b, qt, g: (b, g, qt, 0))
    kv_spec = pl.BlockSpec((1, 1, S, gdk), lambda b, qt, g: (b, g, 0, 0))
    in_specs = [q_spec, kv_spec, kv_spec]
    inputs = [q_p, k_p, v_p]

    if has_mask:
        if mask_batched:
            mask_spec = pl.BlockSpec((1, block_q, S), lambda b, qt, g: (b, qt, 0))
        else:
            mask_spec = pl.BlockSpec((1, block_q, S), lambda b, qt, g: (0, qt, 0))
        in_specs.append(mask_spec)
        inputs.append(mask)

    if wo_full:
        wo_spec = pl.BlockSpec((D, D), lambda b, qt, g: (0, 0))      # fetched once
    else:
        wo_spec = pl.BlockSpec((gdk, D), lambda b, qt, g: (g, 0))
    in_specs.append(wo_spec)
    inputs.append(wot_c)

    out_shapes = [jax.ShapeDtypeStruct((B, S, D), jnp.float32)]
    out_specs = [pl.BlockSpec((1, block_q, D), lambda b, qt, g: (b, qt, 0))]
    if return_attn_weights:
        out_shapes.append(jax.ShapeDtypeStruct((B, n_heads, S, S), attn_dtype))
        out_specs.append(
            pl.BlockSpec((1, G, block_q, S), lambda b, qt, g: (b, g, qt, 0)))

    kernel = functools.partial(
        _mha_core_kernel, n_groups=n_groups, G=G, d_k=d_k,
        has_mask=has_mask, write_attn=return_attn_weights, wo_full=wo_full,
        compute_dtype=compute_dtype, approx_recip=approx_reciprocal)

    results = pl.pallas_call(
        kernel,
        out_shape=tuple(out_shapes),
        grid_spec=pltpu.PrefetchScalarGridSpec(
            num_scalar_prefetch=0,
            grid=grid,
            in_specs=in_specs,
            out_specs=out_specs,
            scratch_shapes=[pltpu.VMEM((block_q, D), jnp.float32)]),
        compiler_params=pltpu.CompilerParams(
            dimension_semantics=("parallel", "parallel", "arbitrary"),
            vmem_limit_bytes=vmem_limit_bytes),
    )(*inputs)

    if return_attn_weights:
        out, attn = results
        return out, attn
    (out,) = results
    return out


def _reference(query, key, value, wq, wk, wv, wo, n_heads, attn_mask=None):
    """Pure-JAX reference mirroring the PyTorch module (f32)."""
    B, S, D = query.shape
    d_k = D // n_heads
    scale = 1.0 / math.sqrt(d_k)

    def split(x):
        return x.reshape(B, S, n_heads, d_k).transpose(0, 2, 1, 3)  # (B,H,S,dk)

    Q = split(query @ wq.T)
    K = split(key @ wk.T)
    V = split(value @ wv.T)
    scores = jnp.einsum("bhqd,bhkd->bhqk", Q, K) * scale
    if attn_mask is not None:
        scores = scores + attn_mask
    attn = jax.nn.softmax(scores, axis=-1)
    ctx = jnp.einsum("bhqk,bhkd->bhqd", attn, V)
    ctx = ctx.transpose(0, 2, 1, 3).reshape(B, S, D)
    return ctx @ wo.T, attn


if __name__ == "__main__":
    B, S, D, H = 2, 8, 32, 4

    root = jax.random.PRNGKey(0)
    k_q, k_k, k_v, k_wq, k_wk, k_wv, k_wo = jax.random.split(root, 7)

    query = jax.random.normal(k_q, (B, S, D), jnp.float32)
    key_in = jax.random.normal(k_k, (B, S, D), jnp.float32)
    value = jax.random.normal(k_v, (B, S, D), jnp.float32)

    # Synthetic weights in PyTorch nn.Linear layout [out, in].
    wq = jax.random.normal(k_wq, (D, D), jnp.float32) * (1.0 / math.sqrt(D))
    wk = jax.random.normal(k_wk, (D, D), jnp.float32) * (1.0 / math.sqrt(D))
    wv = jax.random.normal(k_wv, (D, D), jnp.float32) * (1.0 / math.sqrt(D))
    wo = jax.random.normal(k_wo, (D, D), jnp.float32) * (1.0 / math.sqrt(D))

    ref_out, ref_attn = _reference(query, key_in, value, wq, wk, wv, wo, H)

    # --- exact-precision path (f32 MXU operands, exact reciprocal) ----------
    out32, attn32 = onnx_multihead_attention(
        query, key_in, value, wq, wk, wv, wo, n_heads=H,
        compute_dtype=jnp.float32, approx_reciprocal=False)
    out32 = jax.block_until_ready(out32)
    attn32 = jax.block_until_ready(attn32)
    assert out32.shape == (B, S, D) and attn32.shape == (B, H, S, S)
    assert jnp.allclose(out32, ref_out, atol=1e-3, rtol=1e-3)
    assert jnp.allclose(attn32, ref_attn, atol=1e-4, rtol=1e-4)

    # --- causal-mask path ----------------------------------------------------
    causal = jnp.where(jnp.tril(jnp.ones((S, S), bool)), 0.0, -1e9).astype(jnp.float32)
    out_m, attn_m = onnx_multihead_attention(
        query, key_in, value, wq, wk, wv, wo, n_heads=H, attn_mask=causal,
        compute_dtype=jnp.float32, approx_reciprocal=False)
    out_m = jax.block_until_ready(out_m)
    ref_out_m, ref_attn_m = _reference(query, key_in, value, wq, wk, wv, wo, H,
                                       attn_mask=causal)
    assert jnp.allclose(out_m, ref_out_m, atol=1e-3, rtol=1e-3)
    assert jnp.allclose(attn_m, ref_attn_m, atol=1e-4, rtol=1e-4)

    # --- fast path: bf16 MXU operands, EUP approx reciprocal ----------------
    out_bf, attn_bf = onnx_multihead_attention(
        query, key_in, value, wq, wk, wv, wo, n_heads=H,
        compute_dtype=jnp.bfloat16, approx_reciprocal=True)
    out_bf = jax.block_until_ready(out_bf)
    assert jnp.allclose(out_bf, ref_out, atol=1e-1, rtol=1e-1)
    assert jnp.allclose(attn_bf, ref_attn, atol=5e-2, rtol=5e-2)

    # --- no-attention-weights variant (skips the O(S^2) writeback) ----------
    out_noattn = onnx_multihead_attention(
        query, key_in, value, wq, wk, wv, wo, n_heads=H,
        return_attn_weights=False, compute_dtype=jnp.bfloat16,
        approx_reciprocal=True)
    out_noattn = jax.block_until_ready(out_noattn)
    assert out_noattn.shape == (B, S, D)
    assert jnp.allclose(out_noattn, ref_out, atol=1e-1, rtol=1e-1)

    print("KERNEL_OK")
</pallas_src>

<mosaic_0001>
module attributes {stable_mosaic.version = 11 : i64} {
  func.func @_mha_core_kernel(%arg0: i32, %arg1: i32, %arg2: i32, %arg3: memref<1x1x8x32xf32, #tpu.memory_space<vmem>>, %arg4: memref<1x1x8x32xf32, #tpu.memory_space<vmem>>, %arg5: memref<1x1x8x32xf32, #tpu.memory_space<vmem>>, %arg6: memref<32x32xf32, #tpu.memory_space<vmem>>, %arg7: memref<1x8x32xf32, #tpu.memory_space<vmem>>, %arg8: memref<1x4x8x8xf32, #tpu.memory_space<vmem>>, %arg9: memref<8x32xf32, #tpu.memory_space<vmem>>) attributes {dimension_semantics = [#tpu.dimension_semantics<parallel>, #tpu.dimension_semantics<parallel>, #tpu.dimension_semantics<arbitrary>], iteration_bounds = array<i64: 2, 1, 1>, scalar_prefetch = 0 : i64, scratch_operands = 1 : i64, tpu.core_type = #tpu.core_type<tc>, window_params = [{transform_indices = @transform_0, window_bounds = array<i64: 1, 1, 8, 32>}, {transform_indices = @transform_1, window_bounds = array<i64: 1, 1, 8, 32>}, {transform_indices = @transform_2, window_bounds = array<i64: 1, 1, 8, 32>}, {pipeline_mode = #tpu.pipeline_mode<synchronous>, transform_indices = @transform_3, window_bounds = array<i64: 32, 32>}, {transform_indices = @transform_4, window_bounds = array<i64: 1, 8, 32>}, {transform_indices = @transform_5, window_bounds = array<i64: 1, 4, 8, 8>}]} {
    %c0_i32 = arith.constant 0 : i32
    %0 = arith.cmpi eq, %arg2, %c0_i32 : i32
    %1 = arith.extui %0 : i1 to i32
    %c0_i32_0 = arith.constant 0 : i32
    %2 = arith.cmpi ne, %1, %c0_i32_0 : i32
    scf.if %2 {
      %cst_49 = arith.constant 0.000000e+00 : f32
      %90 = vector.broadcast %cst_49 : f32 to vector<8x32xf32>
      %c0_50 = arith.constant 0 : index
      %c0_51 = arith.constant 0 : index
      %91 = vector.load %arg9[%c0_50, %c0_51] : memref<8x32xf32, #tpu.memory_space<vmem>>, vector<8x32xf32>
      tpu.vector_store %arg9[%c0_50, %c0_51], %90 {strides = array<i32>} : memref<8x32xf32, #tpu.memory_space<vmem>>, vector<8x32xf32>,
    } else {
    }
    %c0 = arith.constant 0 : index
    %c0_1 = arith.constant 0 : index
    %c0_2 = arith.constant 0 : index
    %c0_3 = arith.constant 0 : index
    %3 = vector.load %arg3[%c0, %c0_1, %c0_2, %c0_3] : memref<1x1x8x32xf32, #tpu.memory_space<vmem>>, vector<1x1x8x32xf32>
    %4 = vector.shape_cast %3 : vector<1x1x8x32xf32> to vector<8x32xf32>
    %c0_4 = arith.constant 0 : index
    %c0_5 = arith.constant 0 : index
    %c0_6 = arith.constant 0 : index
    %c0_7 = arith.constant 0 : index
    %5 = vector.load %arg4[%c0_4, %c0_5, %c0_6, %c0_7] : memref<1x1x8x32xf32, #tpu.memory_space<vmem>>, vector<1x1x8x32xf32>
    %6 = vector.shape_cast %5 : vector<1x1x8x32xf32> to vector<8x32xf32>
    %c0_8 = arith.constant 0 : index
    %c0_9 = arith.constant 0 : index
    %c0_10 = arith.constant 0 : index
    %c0_11 = arith.constant 0 : index
    %7 = vector.load %arg5[%c0_8, %c0_9, %c0_10, %c0_11] : memref<1x1x8x32xf32, #tpu.memory_space<vmem>>, vector<1x1x8x32xf32>
    %8 = vector.shape_cast %7 : vector<1x1x8x32xf32> to vector<8x32xf32>
    %c0_12 = arith.constant 0 : index
    %c0_13 = arith.constant 0 : index
    %9 = vector.load %arg6[%c0_12, %c0_13] : memref<32x32xf32, #tpu.memory_space<vmem>>, vector<32x32xf32>
    %10 = vector.extract_strided_slice %4 {offsets = [0, 0], sizes = [8, 8], strides = [1, 1]} : vector<8x32xf32> to vector<8x8xf32>
    %11 = vector.extract_strided_slice %6 {offsets = [0, 0], sizes = [8, 8], strides = [1, 1]} : vector<8x32xf32> to vector<8x8xf32>
    %12 = vector.extract_strided_slice %8 {offsets = [0, 0], sizes = [8, 8], strides = [1, 1]} : vector<8x32xf32> to vector<8x8xf32>
    %cst = arith.constant dense<0.000000e+00> : vector<8x8xf32>
    %13 = tpu.matmul %10, %11, %cst {dimension_numbers = #tpu.dot_dimension_numbers<[1], [1], [0], [0], [0, 0, 1, 0], [], []>} : vector<8x8xf32>, vector<8x8xf32>, vector<8x8xf32> -> vector<8x8xf32>
    %cst_14 = arith.constant dense<0xFF800000> : vector<8xf32>
    %14 = vector.multi_reduction <maximumf>, %13, %cst_14 [1] : vector<8x8xf32> to vector<8xf32>
    %15 = vector.shape_cast %14 : vector<8xf32> to vector<8x1xf32>
    %16 = vector.broadcast %15 : vector<8x1xf32> to vector<8x8xf32>
    %17 = arith.subf %13, %16 : vector<8x8xf32>
    %18 = math.exp %17 : vector<8x8xf32>
    %cst_15 = arith.constant dense<0.000000e+00> : vector<8xf32>
    %19 = vector.multi_reduction <add>, %18, %cst_15 [1] : vector<8x8xf32> to vector<8xf32>
    %20 = vector.shape_cast %19 : vector<8xf32> to vector<8x1xf32>
    %21 = tpu.reciprocal %20 : vector<8x1xf32> -> vector<8x1xf32>
    %22 = vector.broadcast %21 : vector<8x1xf32> to vector<8x8xf32>
    %23 = arith.mulf %18, %22 : vector<8x8xf32>
    %c0_16 = arith.constant 0 : index
    %c0_17 = arith.constant 0 : index
    %c0_18 = arith.constant 0 : index
    %c0_19 = arith.constant 0 : index
    %24 = vector.load %arg8[%c0_16, %c0_17, %c0_18, %c0_19] : memref<1x4x8x8xf32, #tpu.memory_space<vmem>>, vector<1x1x8x8xf32>
    %25 = vector.shape_cast %24 : vector<1x1x8x8xf32> to vector<8x8xf32>
    %26 = vector.shape_cast %23 : vector<8x8xf32> to vector<1x1x8x8xf32>
    tpu.vector_store %arg8[%c0_16, %c0_17, %c0_18, %c0_19], %26 {strides = array<i32>} : memref<1x4x8x8xf32, #tpu.memory_space<vmem>>, vector<1x1x8x8xf32>,
    %cst_20 = arith.constant dense<0.000000e+00> : vector<8x8xf32>
    %27 = tpu.matmul %23, %12, %cst_20 {dimension_numbers = #tpu.dot_dimension_numbers<[1], [0], [0], [1], [0, 0, 1, 1], [], []>} : vector<8x8xf32>, vector<8x8xf32>, vector<8x8xf32> -> vector<8x8xf32>
    %28 = vector.extract_strided_slice %4 {offsets = [0, 8], sizes = [8, 8], strides = [1, 1]} : vector<8x32xf32> to vector<8x8xf32>
    %29 = vector.extract_strided_slice %6 {offsets = [0, 8], sizes = [8, 8], strides = [1, 1]} : vector<8x32xf32> to vector<8x8xf32>
    %30 = vector.extract_strided_slice %8 {offsets = [0, 8], sizes = [8, 8], strides = [1, 1]} : vector<8x32xf32> to vector<8x8xf32>
    %cst_21 = arith.constant dense<0.000000e+00> : vector<8x8xf32>
    %31 = tpu.matmul %28, %29, %cst_21 {dimension_numbers = #tpu.dot_dimension_numbers<[1], [1], [0], [0], [0, 0, 1, 0], [], []>} : vector<8x8xf32>, vector<8x8xf32>, vector<8x8xf32> -> vector<8x8xf32>
    %cst_22 = arith.constant dense<0xFF800000> : vector<8xf32>
    %32 = vector.multi_reduction <maximumf>, %31, %cst_22 [1] : vector<8x8xf32> to vector<8xf32>
    %33 = vector.shape_cast %32 : vector<8xf32> to vector<8x1xf32>
    %34 = vector.broadcast %33 : vector<8x1xf32> to vector<8x8xf32>
    %35 = arith.subf %31, %34 : vector<8x8xf32>
    %36 = math.exp %35 : vector<8x8xf32>
    %cst_23 = arith.constant dense<0.000000e+00> : vector<8xf32>
    %37 = vector.multi_reduction <add>, %36, %cst_23 [1] : vector<8x8xf32> to vector<8xf32>
    %38 = vector.shape_cast %37 : vector<8xf32> to vector<8x1xf32>
    %39 = tpu.reciprocal %38 : vector<8x1xf32> -> vector<8x1xf32>
    %40 = vector.broadcast %39 : vector<8x1xf32> to vector<8x8xf32>
    %41 = arith.mulf %36, %40 : vector<8x8xf32>
    %c0_24 = arith.constant 0 : index
    %c1 = arith.constant 1 : index
    %c0_25 = arith.constant 0 : index
    %c0_26 = arith.constant 0 : index
    %42 = vector.load %arg8[%c0_24, %c1, %c0_25, %c0_26] : memref<1x4x8x8xf32, #tpu.memory_space<vmem>>, vector<1x1x8x8xf32>
    %43 = vector.shape_cast %42 : vector<1x1x8x8xf32> to vector<8x8xf32>
    %44 = vector.shape_cast %41 : vector<8x8xf32> to vector<1x1x8x8xf32>
    tpu.vector_store %arg8[%c0_24, %c1, %c0_25, %c0_26], %44 {strides = array<i32>} : memref<1x4x8x8xf32, #tpu.memory_space<vmem>>, vector<1x1x8x8xf32>,
    %cst_27 = arith.constant dense<0.000000e+00> : vector<8x8xf32>
    %45 = tpu.matmul %41, %30, %cst_27 {dimension_numbers = #tpu.dot_dimension_numbers<[1], [0], [0], [1], [0, 0, 1, 1], [], []>} : vector<8x8xf32>, vector<8x8xf32>, vector<8x8xf32> -> vector<8x8xf32>
    %46 = vector.extract_strided_slice %4 {offsets = [0, 16], sizes = [8, 8], strides = [1, 1]} : vector<8x32xf32> to vector<8x8xf32>
    %47 = vector.extract_strided_slice %6 {offsets = [0, 16], sizes = [8, 8], strides = [1, 1]} : vector<8x32xf32> to vector<8x8xf32>
    %48 = vector.extract_strided_slice %8 {offsets = [0, 16], sizes = [8, 8], strides = [1, 1]} : vector<8x32xf32> to vector<8x8xf32>
    %cst_28 = arith.constant dense<0.000000e+00> : vector<8x8xf32>
    %49 = tpu.matmul %46, %47, %cst_28 {dimension_numbers = #tpu.dot_dimension_numbers<[1], [1], [0], [0], [0, 0, 1, 0], [], []>} : vector<8x8xf32>, vector<8x8xf32>, vector<8x8xf32> -> vector<8x8xf32>
    %cst_29 = arith.constant dense<0xFF800000> : vector<8xf32>
    %50 = vector.multi_reduction <maximumf>, %49, %cst_29 [1] : vector<8x8xf32> to vector<8xf32>
    %51 = vector.shape_cast %50 : vector<8xf32> to vector<8x1xf32>
    %52 = vector.broadcast %51 : vector<8x1xf32> to vector<8x8xf32>
    %53 = arith.subf %49, %52 : vector<8x8xf32>
    %54 = math.exp %53 : vector<8x8xf32>
    %cst_30 = arith.constant dense<0.000000e+00> : vector<8xf32>
    %55 = vector.multi_reduction <add>, %54, %cst_30 [1] : vector<8x8xf32> to vector<8xf32>
    %56 = vector.shape_cast %55 : vector<8xf32> to vector<8x1xf32>
    %57 = tpu.reciprocal %56 : vector<8x1xf32> -> vector<8x1xf32>
    %58 = vector.broadcast %57 : vector<8x1xf32> to vector<8x8xf32>
    %59 = arith.mulf %54, %58 : vector<8x8xf32>
    %c0_31 = arith.constant 0 : index
    %c2 = arith.constant 2 : index
    %c0_32 = arith.constant 0 : index
    %c0_33 = arith.constant 0 : index
    %60 = vector.load %arg8[%c0_31, %c2, %c0_32, %c0_33] : memref<1x4x8x8xf32, #tpu.memory_space<vmem>>, vector<1x1x8x8xf32>
    %61 = vector.shape_cast %60 : vector<1x1x8x8xf32> to vector<8x8xf32>
    %62 = vector.shape_cast %59 : vector<8x8xf32> to vector<1x1x8x8xf32>
    tpu.vector_store %arg8[%c0_31, %c2, %c0_32, %c0_33], %62 {strides = array<i32>} : memref<1x4x8x8xf32, #tpu.memory_space<vmem>>, vector<1x1x8x8xf32>,
    %cst_34 = arith.constant dense<0.000000e+00> : vector<8x8xf32>
    %63 = tpu.matmul %59, %48, %cst_34 {dimension_numbers = #tpu.dot_dimension_numbers<[1], [0], [0], [1], [0, 0, 1, 1], [], []>} : vector<8x8xf32>, vector<8x8xf32>, vector<8x8xf32> -> vector<8x8xf32>
    %64 = vector.extract_strided_slice %4 {offsets = [0, 24], sizes = [8, 8], strides = [1, 1]} : vector<8x32xf32> to vector<8x8xf32>
    %65 = vector.extract_strided_slice %6 {offsets = [0, 24], sizes = [8, 8], strides = [1, 1]} : vector<8x32xf32> to vector<8x8xf32>
    %66 = vector.extract_strided_slice %8 {offsets = [0, 24], sizes = [8, 8], strides = [1, 1]} : vector<8x32xf32> to vector<8x8xf32>
    %cst_35 = arith.constant dense<0.000000e+00> : vector<8x8xf32>
    %67 = tpu.matmul %64, %65, %cst_35 {dimension_numbers = #tpu.dot_dimension_numbers<[1], [1], [0], [0], [0, 0, 1, 0], [], []>} : vector<8x8xf32>, vector<8x8xf32>, vector<8x8xf32> -> vector<8x8xf32>
    %cst_36 = arith.constant dense<0xFF800000> : vector<8xf32>
    %68 = vector.multi_reduction <maximumf>, %67, %cst_36 [1] : vector<8x8xf32> to vector<8xf32>
    %69 = vector.shape_cast %68 : vector<8xf32> to vector<8x1xf32>
    %70 = vector.broadcast %69 : vector<8x1xf32> to vector<8x8xf32>
    %71 = arith.subf %67, %70 : vector<8x8xf32>
    %72 = math.exp %71 : vector<8x8xf32>
    %cst_37 = arith.constant dense<0.000000e+00> : vector<8xf32>
    %73 = vector.multi_reduction <add>, %72, %cst_37 [1] : vector<8x8xf32> to vector<8xf32>
    %74 = vector.shape_cast %73 : vector<8xf32> to vector<8x1xf32>
    %75 = tpu.reciprocal %74 : vector<8x1xf32> -> vector<8x1xf32>
    %76 = vector.broadcast %75 : vector<8x1xf32> to vector<8x8xf32>
    %77 = arith.mulf %72, %76 : vector<8x8xf32>
    %c0_38 = arith.constant 0 : index
    %c3 = arith.constant 3 : index
    %c0_39 = arith.constant 0 : index
    %c0_40 = arith.constant 0 : index
    %78 = vector.load %arg8[%c0_38, %c3, %c0_39, %c0_40] : memref<1x4x8x8xf32, #tpu.memory_space<vmem>>, vector<1x1x8x8xf32>
    %79 = vector.shape_cast %78 : vector<1x1x8x8xf32> to vector<8x8xf32>
    %80 = vector.shape_cast %77 : vector<8x8xf32> to vector<1x1x8x8xf32>
    tpu.vector_store %arg8[%c0_38, %c3, %c0_39, %c0_40], %80 {strides = array<i32>} : memref<1x4x8x8xf32, #tpu.memory_space<vmem>>, vector<1x1x8x8xf32>,
    %cst_41 = arith.constant dense<0.000000e+00> : vector<8x8xf32>
    %81 = tpu.matmul %77, %66, %cst_41 {dimension_numbers = #tpu.dot_dimension_numbers<[1], [0], [0], [1], [0, 0, 1, 1], [], []>} : vector<8x8xf32>, vector<8x8xf32>, vector<8x8xf32> -> vector<8x8xf32>
    %82 = tpu.concatenate %27, %45, %63, %81 in 1 : vector<8x8xf32>, vector<8x8xf32>, vector<8x8xf32>, vector<8x8xf32> -> vector<8x32xf32>
    %c0_42 = arith.constant 0 : index
    %c0_43 = arith.constant 0 : index
    %83 = vector.load %arg9[%c0_42, %c0_43] : memref<8x32xf32, #tpu.memory_space<vmem>>, vector<8x32xf32>
    %cst_44 = arith.constant dense<0.000000e+00> : vector<8x32xf32>
    %84 = tpu.matmul %82, %9, %cst_44 {dimension_numbers = #tpu.dot_dimension_numbers<[1], [0], [0], [1], [0, 0, 1, 1], [], []>} : vector<8x32xf32>, vector<32x32xf32>, vector<8x32xf32> -> vector<8x32xf32>
    %85 = arith.addf %83, %84 : vector<8x32xf32>
    %c0_45 = arith.constant 0 : index
    %c0_46 = arith.constant 0 : index
    %86 = vector.load %arg9[%c0_45, %c0_46] : memref<8x32xf32, #tpu.memory_space<vmem>>, vector<8x32xf32>
    tpu.vector_store %arg9[%c0_45, %c0_46], %85 {strides = array<i32>} : memref<8x32xf32, #tpu.memory_space<vmem>>, vector<8x32xf32>,
    %c0_i32_47 = arith.constant 0 : i32
    %87 = arith.cmpi eq, %arg2, %c0_i32_47 : i32
    %88 = arith.extui %87 : i1 to i32
    %c0_i32_48 = arith.constant 0 : i32
    %89 = arith.cmpi ne, %88, %c0_i32_48 : i32
    scf.if %89 {
      %c0_49 = arith.constant 0 : index
      %c0_50 = arith.constant 0 : index
      %90 = vector.load %arg9[%c0_49, %c0_50] : memref<8x32xf32, #tpu.memory_space<vmem>>, vector<8x32xf32>
      %c0_51 = arith.constant 0 : index
      %c0_52 = arith.constant 0 : index
      %c0_53 = arith.constant 0 : index
      %91 = vector.load %arg7[%c0_51, %c0_52, %c0_53] : memref<1x8x32xf32, #tpu.memory_space<vmem>>, vector<1x8x32xf32>
      %92 = vector.shape_cast %91 : vector<1x8x32xf32> to vector<8x32xf32>
      %93 = vector.shape_cast %90 : vector<8x32xf32> to vector<1x8x32xf32>
      tpu.vector_store %arg7[%c0_51, %c0_52, %c0_53], %93 {strides = array<i32>} : memref<1x8x32xf32, #tpu.memory_space<vmem>>, vector<1x8x32xf32>,
    } else {
    }
    return
  }
  func.func @transform_0(%arg0: i32, %arg1: i32, %arg2: i32) -> (i32, i32, i32, i32) {
    %c0_i32 = arith.constant 0 : i32
    %c0_i32_0 = arith.constant 0 : i32
    return %arg0, %arg2, %arg1, %c0_i32 : i32, i32, i32, i32
  }
  func.func @transform_1(%arg0: i32, %arg1: i32, %arg2: i32) -> (i32, i32, i32, i32) {
    %c0_i32 = arith.constant 0 : i32
    %c0_i32_0 = arith.constant 0 : i32
    %c0_i32_1 = arith.constant 0 : i32
    return %arg0, %arg2, %c0_i32, %c0_i32_0 : i32, i32, i32, i32
  }
  func.func @transform_2(%arg0: i32, %arg1: i32, %arg2: i32) -> (i32, i32, i32, i32) {
    %c0_i32 = arith.constant 0 : i32
    %c0_i32_0 = arith.constant 0 : i32
    %c0_i32_1 = arith.constant 0 : i32
    return %arg0, %arg2, %c0_i32, %c0_i32_0 : i32, i32, i32, i32
  }
  func.func @transform_3(%arg0: i32, %arg1: i32, %arg2: i32) -> (i32, i32) {
    %c0_i32 = arith.constant 0 : i32
    %c0_i32_0 = arith.constant 0 : i32
    %c0_i32_1 = arith.constant 0 : i32
    return %c0_i32, %c0_i32_0 : i32, i32
  }
  func.func @transform_4(%arg0: i32, %arg1: i32, %arg2: i32) -> (i32, i32, i32) {
    %c0_i32 = arith.constant 0 : i32
    %c0_i32_0 = arith.constant 0 : i32
    return %arg0, %arg1, %c0_i32 : i32, i32, i32
  }
  func.func @transform_5(%arg0: i32, %arg1: i32, %arg2: i32) -> (i32, i32, i32, i32) {
    %c0_i32 = arith.constant 0 : i32
    %c0_i32_0 = arith.constant 0 : i32
    return %arg0, %arg2, %arg1, %c0_i32 : i32, i32, i32, i32
  }
}

</mosaic_0001>

<llo_original>
// kernel: tpu_custom_call.1
$region0: #{tpu_custom_call.1}
  #allocation0 [shape = 'u32[]', space=smem, size = 0x4, offset = 0x4, fixed_abs, tag = 'smem constant byte address 0x4 - core index']
  #allocation1 [shape = 'u32[72,128]{1,0:T(1,128)}', space=vmem, size = 0x9000, scoped, tag = 'internal scratch']
  #allocation2 [shape = 'f32[8,32]{1,0:T(8,128)}', space=vmem, size = 0x1000, scoped, tag = 'scratch operand']
  %s0 = inlined_call_operand.hbm [shape: f32[2,1,8,32], index: 0, kind: input, shape index: {}]
  %s1 = inlined_call_operand.hbm [shape: f32[2,1,8,32], index: 1, kind: input, shape index: {}]
  %s2 = inlined_call_operand.hbm [shape: f32[2,1,8,32], index: 2, kind: input, shape index: {}]
  %s3 = inlined_call_operand.hbm [shape: f32[32,32], index: 3, kind: input, shape index: {}]
  %s4 = inlined_call_operand.hbm [shape: f32[2,8,32], index: 4, kind: output, shape index: {0}]
  %s5 = inlined_call_operand.hbm [shape: f32[2,4,8,8], index: 5, kind: output, shape index: {1}]
  %6 = xla_tuple %s4, %s5
  %s7 = sld [smem:[#allocation0]]
  $region81: #{tpu_custom_call.1} parent=0
    _
  %s9 = ssub.s32 1, %s7
  %s10 = scalar_select 0, %s9, %s7
  $region1: #{tpu_custom_call.1} parent=0
    #allocation3 [shape = 'u8[8192]{0}', space=vmem, size = 0x2000, scoped, tag = 'input window, operand 0']
    #allocation4 [shape = 's32[2]{0}', space=sflag, size = 0x8, scoped, tag = 'scoped memory for tpu_custom_call.1']
    #allocation5 [shape = 's32[2]{0}', space=sflag, size = 0x8, scoped, tag = 'scoped memory for tpu_custom_call.1']
    #allocation6 [shape = 'u8[8192]{0}', space=vmem, size = 0x2000, scoped, tag = 'input window, operand 1']
    #allocation7 [shape = 's32[2]{0}', space=sflag, size = 0x8, scoped, tag = 'scoped memory for tpu_custom_call.1']
    #allocation8 [shape = 'u8[8192]{0}', space=vmem, size = 0x2000, scoped, tag = 'input window, operand 2']
    #allocation9 [shape = 'u8[16384]{0}', space=vmem, size = 0x4000, scoped, tag = 'input window, operand 3, single buffered']
    #allocation10 [shape = 's32[1]{0}', space=sflag, size = 0x4, scoped, tag = 'scoped memory for tpu_custom_call.1']
    #allocation11 [shape = 'u8[8192]{0}', space=vmem, size = 0x2000, scoped, tag = 'output window, operand 0']
    #allocation12 [shape = 'u8[32768]{0}', space=vmem, size = 0x8000, scoped, tag = 'output window, operand 1']
    #allocation13 [shape = 's32[2]{0}', space=sflag, size = 0x8, scoped, tag = 'scoped memory for tpu_custom_call.1']
    %11 = vsyncpa [#allocation4], 0
    %s12 = scalar_lea.sflag [#allocation4], 1
    %13 = vsyncpa %s12, 0
    %14 = vsyncpa [#allocation7], 0
    %s15 = scalar_lea.sflag [#allocation7], 1
    %16 = vsyncpa %s15, 0
    %17 = vsyncpa [#allocation10], 0
    %18 = vsyncpa [#allocation5], 0
    %s19 = scalar_lea.sflag [#allocation5], 1
    %20 = vsyncpa %s19, 0
    %21 = vsyncpa [#allocation13], 0
    %s22 = scalar_lea.sflag [#allocation13], 1
    %23 = vsyncpa %s22, 0
    loop: start=0, step=1, limit=4
    $region2: #{tpu_custom_call.1} parent=1 // loop_pre_header
      _
    $region3: #{tpu_custom_call.1} parent=1 // loop_header
      %s25 = sphi 0, %s29
      %p26 = scmp.ge.s32.totalorder %s25, 4
      %s32 = sphi 0, %s51
      %s33 = sphi 0, %s47
      %s34 = sphi 0, %s43
      %s35 = sphi 0, %s32
      %s36 = sphi 0, %s33
      %s37 = sphi 0, %s34
      %s38 = sphi 0, %s35
      %s39 = sphi 0, %s36
      %s40 = sphi 0, %s37
      %s58 = sphi 0, %s60
      %s61 = sphi 0, %s58
      %s62 = sphi 0, %s61
      %s78 = sphi 0, %s62
      %s86 = sphi 0, %s88
      %s89 = sphi 0, %s86
      %s90 = sphi 0, %s89
      %s106 = sphi 0, %s90
      %s114 = sphi 0, %s116
      %s117 = sphi 0, %s114
      %s118 = sphi 0, %s117
      %s134 = sphi 0, %s118
      %s138 = sphi 0, %s138
      %s140 = sphi 0, %s138
      %s141 = sphi 0, %s140
      %s155 = sphi 0, %s141
      %s163 = sphi 0, %s165
      %s166 = sphi 0, %s163
      %s167 = sphi 0, %s166
      %s183 = sphi 0, %s167
      %s193 = sphi 0, %s195
      %s196 = sphi 0, %s193
      %s197 = sphi 0, %s196
      %s213 = sphi 0, %s197
    $region4: #{tpu_custom_call.1} parent=1 // loop_header_branch
      %28 = sbr.rel (%p26) target = $region8
    $region5: #{tpu_custom_call.1} parent=1 // loop_body
      %s30 = ssub.s32 %s25, 1
      %s31 = ssub.s32 %s25, 2
      %s41 = sadd.s32 1, %s34
      %p42 = scmp.ge.s32.totalorder %s41, 1
      %s43 = scalar_select %p42, 0, %s41
      %s44 = sadd.s32 1, %s33
      %s45 = scalar_select %p42, %s44, %s33
      %p46 = scmp.ge.s32.totalorder %s45, 1
      %s47 = scalar_select %p46, 0, %s45
      %s48 = sadd.s32 1, %s32
      %s49 = scalar_select %p46, %s48, %s32
      %p50 = scmp.ge.s32.totalorder %s49, 2
      %s51 = scalar_select %p50, 0, %s49
      %s52 = ssub.s32 %s32, %s51
      %s53 = ssub.s32 %s34, %s43
      %s54 = sor.u32 %s52, %s53
      %s55 = ssub.s32 %s33, %s47
      %s56 = sor.u32 %s54, %s55
      %p57 = scmp.eq.s32.totalorder %s56, 0
      %s59 = sadd.s32 %s58, 1
      %s60 = scalar_select %p57, %s58, %s59
      %p63 = pneg %p57
      %p64 = scmp.eq.s32.totalorder %s25, 1
      %p65 = por %p63, %p64
      %p66 = scmp.ne.s32.totalorder %s58, %s61
      %p67 = scmp.eq.s32.totalorder %s25, 0
      %p68 = por %p66, %p67
      %p69 = scmp.ne.s32.totalorder %s58, %s61
      %p70 = scmp.eq.s32.totalorder %s30, 1
      %p71 = por %p69, %p70
      %p72 = scmp.ne.s32.totalorder %s61, %s62
      %p73 = scmp.eq.s32.totalorder %s30, 0
      %p74 = por %p72, %p73
      %p75 = scmp.ne.s32.totalorder %s61, %s62
      %p76 = scmp.eq.s32.totalorder %s31, 1
      %p77 = por %p75, %p76
      %p79 = scmp.ne.s32.totalorder %s62, %s78
      %p80 = scmp.eq.s32.totalorder %s31, 0
      %p81 = por %p79, %p80
      %s82 = ssub.s32 %s32, %s51
      %s83 = ssub.s32 %s34, %s43
      %s84 = sor.u32 %s82, %s83
      %p85 = scmp.eq.s32.totalorder %s84, 0
      %s87 = sadd.s32 %s86, 1
      %s88 = scalar_select %p85, %s86, %s87
      %p91 = pneg %p85
      %p92 = scmp.eq.s32.totalorder %s25, 1
      %p93 = por %p91, %p92
      %p94 = scmp.ne.s32.totalorder %s86, %s89
      %p95 = scmp.eq.s32.totalorder %s25, 0
      %p96 = por %p94, %p95
      %p97 = scmp.ne.s32.totalorder %s86, %s89
      %p98 = scmp.eq.s32.totalorder %s30, 1
      %p99 = por %p97, %p98
      %p100 = scmp.ne.s32.totalorder %s89, %s90
      %p101 = scmp.eq.s32.totalorder %s30, 0
      %p102 = por %p100, %p101
      %p103 = scmp.ne.s32.totalorder %s89, %s90
      %p104 = scmp.eq.s32.totalorder %s31, 1
      %p105 = por %p103, %p104
      %p107 = scmp.ne.s32.totalorder %s90, %s106
      %p108 = scmp.eq.s32.totalorder %s31, 0
      %p109 = por %p107, %p108
      %s110 = ssub.s32 %s32, %s51
      %s111 = ssub.s32 %s34, %s43
      %s112 = sor.u32 %s110, %s111
      %p113 = scmp.eq.s32.totalorder %s112, 0
      %s115 = sadd.s32 %s114, 1
      %s116 = scalar_select %p113, %s114, %s115
      %p119 = pneg %p113
      %p120 = scmp.eq.s32.totalorder %s25, 1
      %p121 = por %p119, %p120
      %p122 = scmp.ne.s32.totalorder %s114, %s117
      %p123 = scmp.eq.s32.totalorder %s25, 0
      %p124 = por %p122, %p123
      %p125 = scmp.ne.s32.totalorder %s114, %s117
      %p126 = scmp.eq.s32.totalorder %s30, 1
      %p127 = por %p125, %p126
      %p128 = scmp.ne.s32.totalorder %s117, %s118
      %p129 = scmp.eq.s32.totalorder %s30, 0
      %p130 = por %p128, %p129
      %p131 = scmp.ne.s32.totalorder %s117, %s118
      %p132 = scmp.eq.s32.totalorder %s31, 1
      %p133 = por %p131, %p132
      %p135 = scmp.ne.s32.totalorder %s118, %s134
      %p136 = scmp.eq.s32.totalorder %s31, 0
      %p137 = por %p135, %p136
      %s139 = sadd.s32 %s138, 1
      %p142 = scmp.eq.s32.totalorder %s25, 1
      %p143 = scmp.ne.s32.totalorder %s138, %s140
      %p144 = scmp.eq.s32.totalorder %s25, 0
      %p145 = por %p143, %p144
      %p146 = scmp.ne.s32.totalorder %s138, %s140
      %p147 = scmp.eq.s32.totalorder %s30, 1
      %p148 = por %p146, %p147
      %p149 = scmp.ne.s32.totalorder %s140, %s141
      %p150 = scmp.eq.s32.totalorder %s30, 0
      %p151 = por %p149, %p150
      %p152 = scmp.ne.s32.totalorder %s140, %s141
      %p153 = scmp.eq.s32.totalorder %s31, 1
      %p154 = por %p152, %p153
      %p156 = scmp.ne.s32.totalorder %s141, %s155
      %p157 = scmp.eq.s32.totalorder %s31, 0
      %p158 = por %p156, %p157
      %s159 = ssub.s32 %s32, %s51
      %s160 = ssub.s32 %s33, %s47
      %s161 = sor.u32 %s159, %s160
      %p162 = scmp.eq.s32.totalorder %s161, 0
      %s164 = sadd.s32 %s163, 1
      %s165 = scalar_select %p162, %s163, %s164
      %p168 = pneg %p162
      %p169 = scmp.eq.s32.totalorder %s25, 1
      %p170 = por %p168, %p169
      %p171 = scmp.ne.s32.totalorder %s163, %s166
      %p172 = scmp.eq.s32.totalorder %s25, 0
      %p173 = por %p171, %p172
      %p174 = scmp.ne.s32.totalorder %s163, %s166
      %p175 = scmp.eq.s32.totalorder %s30, 1
      %p176 = por %p174, %p175
      %p177 = scmp.ne.s32.totalorder %s166, %s167
      %p178 = scmp.eq.s32.totalorder %s30, 0
      %p179 = por %p177, %p178
      %p180 = scmp.ne.s32.totalorder %s166, %s167
      %p181 = scmp.eq.s32.totalorder %s31, 1
      %p182 = por %p180, %p181
      %p184 = scmp.ne.s32.totalorder %s167, %s183
      %p185 = scmp.eq.s32.totalorder %s31, 0
      %p186 = por %p184, %p185
      %s187 = ssub.s32 %s32, %s51
      %s188 = ssub.s32 %s34, %s43
      %s189 = sor.u32 %s187, %s188
      %s190 = ssub.s32 %s33, %s47
      %s191 = sor.u32 %s189, %s190
      %p192 = scmp.eq.s32.totalorder %s191, 0
      %s194 = sadd.s32 %s193, 1
      %s195 = scalar_select %p192, %s193, %s194
      %p198 = pneg %p192
      %p199 = scmp.eq.s32.totalorder %s25, 1
      %p200 = por %p198, %p199
      %p201 = scmp.ne.s32.totalorder %s193, %s196
      %p202 = scmp.eq.s32.totalorder %s25, 0
      %p203 = por %p201, %p202
      %p204 = scmp.ne.s32.totalorder %s193, %s196
      %p205 = scmp.eq.s32.totalorder %s30, 1
      %p206 = por %p204, %p205
      %p207 = scmp.ne.s32.totalorder %s196, %s197
      %p208 = scmp.eq.s32.totalorder %s30, 0
      %p209 = por %p207, %p208
      %p210 = scmp.ne.s32.totalorder %s196, %s197
      %p211 = scmp.eq.s32.totalorder %s31, 1
      %p212 = por %p210, %p211
      %p214 = scmp.ne.s32.totalorder %s197, %s213
      %p215 = scmp.eq.s32.totalorder %s31, 0
      %p216 = por %p214, %p215
      %p217 = scmp.le.s32.totalorder 1, %s25
      %p218 = scmp.lt.s32.totalorder %s25, 3
      %p219 = pnand %p217, %p218
      %p220 = pneg %p219
      // Predicated region
      $region9: #{tpu_custom_call.1} parent=5 // pred_check
        _
      $region10: #{tpu_custom_call.1} parent=5 // pred_check_branch
        %222 = sbr.rel (%p219) target = $region12
      $region11: #{tpu_custom_call.1} parent=5 // pred_region
        %s223 = ssub.s32 %s25, 1
        // Predicated region
        $region13: #{tpu_custom_call.1} parent=11 // pred_check
          %p224 = pneg %p151
        $region14: #{tpu_custom_call.1} parent=11 // pred_check_branch
          %226 = sbr.rel (%p224) target = $region16
        $region15: #{tpu_custom_call.1} parent=11 // pred_region
          %228 = vsyncadd [#allocation10], 0
          %s229 = sshll.u32 %s3, 4
          %s230 = int_to_ptr.hbm [resolvable:$true] %s229
          %s231 = sshll.u32 [#allocation9], 4
          %s232 = int_to_ptr.vmem [resolvable:$true] %s231
          %237 = dma.hbm_to_vmem [thread:$0]  %s230, 512, %s232, [#allocation10], 128, 128, 8
        $region16: #{tpu_custom_call.1} parent=11 // pred_fallthru
          _
      $region12: #{tpu_custom_call.1} parent=5 // pred_fallthru
        _
      %p238 = scmp.lt.s32.totalorder %s25, 2
      // Predicated region
      $region17: #{tpu_custom_call.1} parent=5 // pred_check
        %p239 = pneg %p238
      $region18: #{tpu_custom_call.1} parent=5 // pred_check_branch
        %241 = sbr.rel (%p239) target = $region20
      $region19: #{tpu_custom_call.1} parent=5 // pred_region
        // Predicated region
        $region21: #{tpu_custom_call.1} parent=19 // pred_check
          %p242 = pneg %p68
        $region22: #{tpu_custom_call.1} parent=19 // pred_check_branch
          %244 = sbr.rel (%p242) target = $region24
        $region23: #{tpu_custom_call.1} parent=19 // pred_region
          %s245 = sand.u32 %s58, 1
          %s246 = scalar_lea.sflag [#allocation4], %s245
          %s247 = sand.u32 %s58, 1
          %s248 = smul.addr %s247, 8
          %s249 = scalar_lea.vmem [#allocation3], %s248
          %251 = vsyncadd %s246, 0
          %s252 = sadd.s32 %s33, %s34
          %s253 = sadd.s32 %s252, %s32
          %s254 = smul.addr %s253, 8
          %s255 = scalar_lea.hbm %s0, %s254
          %s257 = sshll.u32 %s255, 4
          %s258 = int_to_ptr.hbm [resolvable:$true] %s257
          %s259 = sshll.u32 %s249, 4
          %s260 = int_to_ptr.vmem [resolvable:$true] %s259
          %262 = dma.hbm_to_vmem [thread:$0]  %s258, 128, %s260, %s246
        $region24: #{tpu_custom_call.1} parent=19 // pred_fallthru
          _
        // Predicated region
        $region25: #{tpu_custom_call.1} parent=19 // pred_check
          %p263 = pneg %p96
        $region26: #{tpu_custom_call.1} parent=19 // pred_check_branch
          %265 = sbr.rel (%p263) target = $region28
        $region27: #{tpu_custom_call.1} parent=19 // pred_region
          %s266 = sand.u32 %s25, 1
          %s267 = scalar_lea.sflag [#allocation7], %s266
          %s268 = sand.u32 %s86, 1
          %s269 = smul.addr %s268, 8
          %s270 = scalar_lea.vmem [#allocation6], %s269
          %272 = vsyncadd %s267, 0
          %s273 = sadd.s32 %s34, %s32
          %s274 = smul.addr %s273, 8
          %s275 = scalar_lea.hbm %s1, %s274
          %s277 = sshll.u32 %s275, 4
          %s278 = int_to_ptr.hbm [resolvable:$true] %s277
          %s279 = sshll.u32 %s270, 4
          %s280 = int_to_ptr.vmem [resolvable:$true] %s279
          %282 = dma.hbm_to_vmem [thread:$0]  %s278, 128, %s280, %s267
        $region28: #{tpu_custom_call.1} parent=19 // pred_fallthru
          _
        // Predicated region
        $region29: #{tpu_custom_call.1} parent=19 // pred_check
          %p283 = pneg %p124
        $region30: #{tpu_custom_call.1} parent=19 // pred_check_branch
          %285 = sbr.rel (%p283) target = $region32
        $region31: #{tpu_custom_call.1} parent=19 // pred_region
          %s286 = sand.u32 %s25, 1
          %s287 = scalar_lea.sflag [#allocation7], %s286
          %s288 = sand.u32 %s114, 1
          %s289 = smul.addr %s288, 8
          %s290 = scalar_lea.vmem [#allocation8], %s289
          %292 = vsyncadd %s287, 0
          %s293 = sadd.s32 %s34, %s32
          %s294 = smul.addr %s293, 8
          %s295 = scalar_lea.hbm %s2, %s294
          %s297 = sshll.u32 %s295, 4
          %s298 = int_to_ptr.hbm [resolvable:$true] %s297
          %s299 = sshll.u32 %s290, 4
          %s300 = int_to_ptr.vmem [resolvable:$true] %s299
          %302 = dma.hbm_to_vmem [thread:$0]  %s298, 128, %s300, %s287
        $region32: #{tpu_custom_call.1} parent=19 // pred_fallthru
          _
      $region20: #{tpu_custom_call.1} parent=5 // pred_fallthru
        _
      %p303 = scmp.le.s32.totalorder 1, %s25
      %p304 = scmp.lt.s32.totalorder %s25, 3
      %p305 = pnand %p303, %p304
      %p306 = pneg %p305
      // Predicated region
      $region33: #{tpu_custom_call.1} parent=5 // pred_check
        _
      $region34: #{tpu_custom_call.1} parent=5 // pred_check_branch
        %308 = sbr.rel (%p305) target = $region36
      $region35: #{tpu_custom_call.1} parent=5 // pred_region
        %s309 = ssub.s32 %s25, 1
        %s310 = sand.u32 %s61, 1
        %s311 = scalar_lea.sflag [#allocation4], %s310
        %s312 = sand.u32 %s61, 1
        %s313 = smul.addr %s312, 8
        %s314 = scalar_lea.vmem [#allocation3], %s313
        // Predicated region
        $region37: #{tpu_custom_call.1} parent=35 // pred_check
          %p315 = pneg %p74
        $region38: #{tpu_custom_call.1} parent=35 // pred_check_branch
          %317 = sbr.rel (%p315) target = $region40
        $region39: #{tpu_custom_call.1} parent=35 // pred_region
          %319 = dma.done %s311, 128
        $region40: #{tpu_custom_call.1} parent=35 // pred_fallthru
          _
        %s320 = sand.u32 %s30, 1
        %s321 = scalar_lea.sflag [#allocation7], %s320
        %s322 = sand.u32 %s89, 1
        %s323 = smul.addr %s322, 8
        %s324 = scalar_lea.vmem [#allocation6], %s323
        // Predicated region
        $region41: #{tpu_custom_call.1} parent=35 // pred_check
          %p325 = pneg %p102
        $region42: #{tpu_custom_call.1} parent=35 // pred_check_branch
          %327 = sbr.rel (%p325) target = $region44
        $region43: #{tpu_custom_call.1} parent=35 // pred_region
          %329 = dma.done %s321, 128
        $region44: #{tpu_custom_call.1} parent=35 // pred_fallthru
          _
        %s330 = sand.u32 %s30, 1
        %s331 = scalar_lea.sflag [#allocation7], %s330
        %s332 = sand.u32 %s117, 1
        %s333 = smul.addr %s332, 8
        %s334 = scalar_lea.vmem [#allocation8], %s333
        // Predicated region
        $region45: #{tpu_custom_call.1} parent=35 // pred_check
          %p335 = pneg %p130
        $region46: #{tpu_custom_call.1} parent=35 // pred_check_branch
          %337 = sbr.rel (%p335) target = $region48
        $region47: #{tpu_custom_call.1} parent=35 // pred_region
          %339 = dma.done %s331, 128
        $region48: #{tpu_custom_call.1} parent=35 // pred_fallthru
          _
        // Predicated region
        $region49: #{tpu_custom_call.1} parent=35 // pred_check
          %p340 = pneg %p151
        $region50: #{tpu_custom_call.1} parent=35 // pred_check_branch
          %342 = sbr.rel (%p340) target = $region52
        $region51: #{tpu_custom_call.1} parent=35 // pred_region
          %344 = dma.done [#allocation10], 512
        $region52: #{tpu_custom_call.1} parent=35 // pred_fallthru
          _
        %s345 = sand.u32 %s61, 1
        %s346 = scalar_lea.sflag [#allocation4], %s345
        %s347 = sand.u32 %s61, 1
        %s348 = smul.addr %s347, 8
        %s349 = scalar_lea.vmem [#allocation3], %s348
        %p350 = pneg %p74
        %p351 = pneg %p71
        %s352 = sand.u32 %s30, 1
        %s353 = scalar_lea.sflag [#allocation7], %s352
        %s354 = sand.u32 %s89, 1
        %s355 = smul.addr %s354, 8
        %s356 = scalar_lea.vmem [#allocation6], %s355
        %p357 = pneg %p102
        %p358 = pneg %p99
        %s359 = sand.u32 %s30, 1
        %s360 = scalar_lea.sflag [#allocation7], %s359
        %s361 = sand.u32 %s117, 1
        %s362 = smul.addr %s361, 8
        %s363 = scalar_lea.vmem [#allocation8], %s362
        %p364 = pneg %p130
        %p365 = pneg %p127
        %p366 = pneg %p151
        %p367 = pneg %p148
        %p368 = pneg %p179
        %p369 = pneg %p176
        %s370 = sand.u32 %s166, 1
        %s371 = scalar_lea.sflag [#allocation5], %s370
        %s372 = sand.u32 %s166, 1
        %s373 = smul.addr %s372, 8
        %s374 = scalar_lea.vmem [#allocation11], %s373
        %p375 = pneg %p209
        %p376 = pneg %p206
        %s377 = sand.u32 %s196, 1
        %s378 = scalar_lea.sflag [#allocation13], %s377
        %s379 = sand.u32 %s196, 1
        %s380 = smul.addr %s379, 32
        %s381 = scalar_lea.vmem [#allocation12], %s380
        %s382 = smul.u32 4, %s37
        %p383 = scmp.eq.s32.totalorder %s37, 0
        // Predicated region
        $region53: #{tpu_custom_call.1} parent=35 // pred_check
          %p384 = pneg %p383
        $region54: #{tpu_custom_call.1} parent=35 // pred_check_branch
          %386 = sbr.rel (%p384) target = $region56
        $region55: #{tpu_custom_call.1} parent=35 // pred_region
          %vm387 = vcmask 261120
          %388 = vst.msk [vmem:[#allocation2] sm:$0xff] %vm387, 0.0
        $region56: #{tpu_custom_call.1} parent=35 // pred_fallthru
          _
        %v389 = vld [vmem:[%s314] sm:$0xff]
        %v390 = vld [vmem:[%s324] sm:$0xff]
        %v391 = vld [vmem:[%s334] sm:$0xff]
        %v392 = vld [vmem:[#allocation9] sm:$0xff]
        %v393 = vld [vmem:[#allocation9 + $0x8] sm:$0xff]
        %v394 = vld [vmem:[#allocation9 + $0x10] sm:$0xff]
        %v395 = vld [vmem:[#allocation9 + $0x18] sm:$0xff]
        %vm396 = vcmask 64512
        %v398 = vsel %vm396, %v389, 0
        %v401 = vsel %vm396, %v390, 0
        %403 = vmatpush.xpose.msra.mxu0 0.0
        %404 = vmatpush.xpose.msra.mxu0 0.0
        %405 = vmatpush.xpose.msra.mxu0 0.0
        %406 = vmatpush.xpose.msra.mxu0 0.0
        %407 = vmatpush.xpose.msra.mxu0 0.0
        %408 = vmatpush.xpose.msra.mxu0 0.0
        %409 = vmatpush.xpose.msra.mxu0 0.0
        %410 = vmatpush.xpose.msra.mxu0 0.0
        %411 = vmatpush.xpose.msra.mxu0 0.0
        %412 = vmatpush.xpose.msra.mxu0 0.0
        %413 = vmatpush.xpose.msra.mxu0 0.0
        %414 = vmatpush.xpose.msra.mxu0 0.0
        %415 = vmatpush.xpose.msra.mxu0 0.0
        %416 = vmatpush.xpose.msra.mxu0 0.0
        %417 = vmatpush.xpose.msra.mxu0 0.0
        %418 = vmatpush.xpose.msra.mxu0 %v401
        %419 = vmatmul.f32.gmra.mxu0 %v398
        %v420 = vpop.f32.mrf.mxu0
        %v421 = vadd.f32 0.0, %v420
        %422 = vdwg.mxu0
        %v423 = vsel %vm396, %v421, -inf
        %424 = vmax.xlane.f32.xlu0 %v423
        %v425 = vpop.xlane.xlu0 %424
        %v426 = vsub.f32 %v421, %v425
        %v427 = vmul.f32 %v426, 1.442695
        %v428 = vpow.pop %v427
        %v429 = vsel %vm396, %v428, 0.0
        %430 = vadd.xlane.f32.xlu0 %v429
        %v431 = vpop.xlane.xlu0 %430
        %v432 = vrcp.pop %v431
        %v433 = vmul.f32 %v431, %v432
        %v434 = vsub.f32 1.0, %v433
        %v435 = vmul.f32 %v432, %v434
        %v436 = vadd.f32 %v432, %v435
        %vm437 = vweird.f32 %v431
        %vm438 = vweird.f32 %v432
        %vm439 = vmor %vm437, %vm438
        %v440 = vsel %vm439, %v432, %v436
        %v441 = vand.u32 2147483647, %v431
        %vm442 = vcmp.eq.f32.partialorder %v441, 8.507059e+37
        %v443 = vand.u32 %v431, 2147483648
        %v444 = vor.u32 1.1754944e-38, %v443
        %v445 = vsel %vm442, %v444, %v440
        %v446 = vmul.f32 %v428, %v445
        %447 = vst.msk [vmem:[%s381] sm:$0xff] %vm396, %v446
        %v449 = vsel %vm396, %v446, 0
        %451 = vmatpush.msra.mxu0 0.0
        %452 = vmatpush.msra.mxu0 0.0
        %453 = vmatpush.msra.mxu0 0.0
        %454 = vmatpush.msra.mxu0 0.0
        %455 = vmatpush.msra.mxu0 0.0
        %456 = vmatpush.msra.mxu0 0.0
        %457 = vmatpush.msra.mxu0 0.0
        %458 = vmatpush.msra.mxu0 0.0
        %459 = vmatpush.msra.mxu0 0.0
        %460 = vmatpush.msra.mxu0 0.0
        %461 = vmatpush.msra.mxu0 0.0
        %462 = vmatpush.msra.mxu0 0.0
        %463 = vmatpush.msra.mxu0 0.0
        %464 = vmatpush.msra.mxu0 0.0
        %465 = vmatpush.msra.mxu0 0.0
        %466 = vmatpush.msra.mxu0 %v391
        %467 = vmatmul.f32.gmra.mxu0 %v449
        %v468 = vpop.f32.mrf.mxu0
        %v469 = vadd.f32 0.0, %v468
        %470 = vdwg.mxu0
        %471 = vrot.lane.b32.xlu0 %v389, 120
        %v472 = vpop.permute.xlu0 %471
        %473 = vrot.lane.b32.xlu0 %v390, 120
        %v474 = vpop.permute.xlu0 %473
        %v475 = vsel %vm396, %v472, 0
        %v477 = vsel %vm396, %v474, 0
        %479 = vmatpush.xpose.msra.mxu0 0.0
        %480 = vmatpush.xpose.msra.mxu0 0.0
        %481 = vmatpush.xpose.msra.mxu0 0.0
        %482 = vmatpush.xpose.msra.mxu0 0.0
        %483 = vmatpush.xpose.msra.mxu0 0.0
        %484 = vmatpush.xpose.msra.mxu0 0.0
        %485 = vmatpush.xpose.msra.mxu0 0.0
        %486 = vmatpush.xpose.msra.mxu0 0.0
        %487 = vmatpush.xpose.msra.mxu0 0.0
        %488 = vmatpush.xpose.msra.mxu0 0.0
        %489 = vmatpush.xpose.msra.mxu0 0.0
        %490 = vmatpush.xpose.msra.mxu0 0.0
        %491 = vmatpush.xpose.msra.mxu0 0.0
        %492 = vmatpush.xpose.msra.mxu0 0.0
        %493 = vmatpush.xpose.msra.mxu0 0.0
        %494 = vmatpush.xpose.msra.mxu0 %v477
        %495 = vmatmul.f32.gmra.mxu0 %v475
        %v496 = vpop.f32.mrf.mxu0
        %v497 = vadd.f32 0.0, %v496
        %498 = vdwg.mxu0
        %v499 = vsel %vm396, %v497, -inf
        %500 = vmax.xlane.f32.xlu0 %v499
        %v501 = vpop.xlane.xlu0 %500
        %v502 = vsub.f32 %v497, %v501
        %v503 = vmul.f32 %v502, 1.442695
        %v504 = vpow.pop %v503
        %v505 = vsel %vm396, %v504, 0.0
        %506 = vadd.xlane.f32.xlu0 %v505
        %v507 = vpop.xlane.xlu0 %506
        %v508 = vrcp.pop %v507
        %v509 = vmul.f32 %v507, %v508
        %v510 = vsub.f32 1.0, %v509
        %v511 = vmul.f32 %v508, %v510
        %v512 = vadd.f32 %v508, %v511
        %vm513 = vweird.f32 %v507
        %vm514 = vweird.f32 %v508
        %vm515 = vmor %vm513, %vm514
        %v516 = vsel %vm515, %v508, %v512
        %v517 = vand.u32 2147483647, %v507
        %vm518 = vcmp.eq.f32.partialorder %v517, 8.507059e+37
        %v519 = vand.u32 %v507, 2147483648
        %v520 = vor.u32 1.1754944e-38, %v519
        %v521 = vsel %vm518, %v520, %v516
        %v522 = vmul.f32 %v504, %v521
        %s523 = scalar_lea.vmem %s381, 8 [#allocation12]
        %524 = vst.msk [vmem:[%s523] sm:$0xff] %vm396, %v522
        %526 = vrot.lane.b32.xlu0 %v391, 120
        %v527 = vpop.permute.xlu0 %526
        %v530 = vsel %vm396, %v522, 0
        %532 = vmatpush.msra.mxu0 0.0
        %533 = vmatpush.msra.mxu0 0.0
        %534 = vmatpush.msra.mxu0 0.0
        %535 = vmatpush.msra.mxu0 0.0
        %536 = vmatpush.msra.mxu0 0.0
        %537 = vmatpush.msra.mxu0 0.0
        %538 = vmatpush.msra.mxu0 0.0
        %539 = vmatpush.msra.mxu0 0.0
        %540 = vmatpush.msra.mxu0 0.0
        %541 = vmatpush.msra.mxu0 0.0
        %542 = vmatpush.msra.mxu0 0.0
        %543 = vmatpush.msra.mxu0 0.0
        %544 = vmatpush.msra.mxu0 0.0
        %545 = vmatpush.msra.mxu0 0.0
        %546 = vmatpush.msra.mxu0 0.0
        %547 = vmatpush.msra.mxu0 %v527
        %548 = vmatmul.f32.gmra.mxu0 %v530
        %v549 = vpop.f32.mrf.mxu0
        %v550 = vadd.f32 0.0, %v549
        %551 = vdwg.mxu0
        %552 = vrot.lane.b32.xlu0 %v389, 112
        %v553 = vpop.permute.xlu0 %552
        %554 = vrot.lane.b32.xlu0 %v390, 112
        %v555 = vpop.permute.xlu0 %554
        %v556 = vsel %vm396, %v553, 0
        %v558 = vsel %vm396, %v555, 0
        %560 = vmatpush.xpose.msra.mxu0 0.0
        %561 = vmatpush.xpose.msra.mxu0 0.0
        %562 = vmatpush.xpose.msra.mxu0 0.0
        %563 = vmatpush.xpose.msra.mxu0 0.0
        %564 = vmatpush.xpose.msra.mxu0 0.0
        %565 = vmatpush.xpose.msra.mxu0 0.0
        %566 = vmatpush.xpose.msra.mxu0 0.0
        %567 = vmatpush.xpose.msra.mxu0 0.0
        %568 = vmatpush.xpose.msra.mxu0 0.0
        %569 = vmatpush.xpose.msra.mxu0 0.0
        %570 = vmatpush.xpose.msra.mxu0 0.0
        %571 = vmatpush.xpose.msra.mxu0 0.0
        %572 = vmatpush.xpose.msra.mxu0 0.0
        %573 = vmatpush.xpose.msra.mxu0 0.0
        %574 = vmatpush.xpose.msra.mxu0 0.0
        %575 = vmatpush.xpose.msra.mxu0 %v558
        %576 = vmatmul.f32.gmra.mxu0 %v556
        %v577 = vpop.f32.mrf.mxu0
        %v578 = vadd.f32 0.0, %v577
        %579 = vdwg.mxu0
        %v580 = vsel %vm396, %v578, -inf
        %581 = vmax.xlane.f32.xlu0 %v580
        %v582 = vpop.xlane.xlu0 %581
        %v583 = vsub.f32 %v578, %v582
        %v584 = vmul.f32 %v583, 1.442695
        %v585 = vpow.pop %v584
        %v586 = vsel %vm396, %v585, 0.0
        %587 = vadd.xlane.f32.xlu0 %v586
        %v588 = vpop.xlane.xlu0 %587
        %v589 = vrcp.pop %v588
        %v590 = vmul.f32 %v588, %v589
        %v591 = vsub.f32 1.0, %v590
        %v592 = vmul.f32 %v589, %v591
        %v593 = vadd.f32 %v589, %v592
        %vm594 = vweird.f32 %v588
        %vm595 = vweird.f32 %v589
        %vm596 = vmor %vm594, %vm595
        %v597 = vsel %vm596, %v589, %v593
        %v598 = vand.u32 2147483647, %v588
        %vm599 = vcmp.eq.f32.partialorder %v598, 8.507059e+37
        %v600 = vand.u32 %v588, 2147483648
        %v601 = vor.u32 1.1754944e-38, %v600
        %v602 = vsel %vm599, %v601, %v597
        %v603 = vmul.f32 %v585, %v602
        %s604 = scalar_lea.vmem %s381, 16 [#allocation12]
        %605 = vst.msk [vmem:[%s604] sm:$0xff] %vm396, %v603
        %606 = vrot.lane.b32.xlu0 %v391, 112
        %v607 = vpop.permute.xlu0 %606
        %v610 = vsel %vm396, %v603, 0
        %612 = vmatpush.msra.mxu0 0.0
        %613 = vmatpush.msra.mxu0 0.0
        %614 = vmatpush.msra.mxu0 0.0
        %615 = vmatpush.msra.mxu0 0.0
        %616 = vmatpush.msra.mxu0 0.0
        %617 = vmatpush.msra.mxu0 0.0
        %618 = vmatpush.msra.mxu0 0.0
        %619 = vmatpush.msra.mxu0 0.0
        %620 = vmatpush.msra.mxu0 0.0
        %621 = vmatpush.msra.mxu0 0.0
        %622 = vmatpush.msra.mxu0 0.0
        %623 = vmatpush.msra.mxu0 0.0
        %624 = vmatpush.msra.mxu0 0.0
        %625 = vmatpush.msra.mxu0 0.0
        %626 = vmatpush.msra.mxu0 0.0
        %627 = vmatpush.msra.mxu0 %v607
        %628 = vmatmul.f32.gmra.mxu0 %v610
        %v629 = vpop.f32.mrf.mxu0
        %v630 = vadd.f32 0.0, %v629
        %631 = vdwg.mxu0
        %632 = vrot.lane.b32.xlu0 %v389, 104
        %v633 = vpop.permute.xlu0 %632
        %634 = vrot.lane.b32.xlu0 %v390, 104
        %v635 = vpop.permute.xlu0 %634
        %v636 = vsel %vm396, %v633, 0
        %v638 = vsel %vm396, %v635, 0
        %640 = vmatpush.xpose.msra.mxu0 0.0
        %641 = vmatpush.xpose.msra.mxu0 0.0
        %642 = vmatpush.xpose.msra.mxu0 0.0
        %643 = vmatpush.xpose.msra.mxu0 0.0
        %644 = vmatpush.xpose.msra.mxu0 0.0
        %645 = vmatpush.xpose.msra.mxu0 0.0
        %646 = vmatpush.xpose.msra.mxu0 0.0
        %647 = vmatpush.xpose.msra.mxu0 0.0
        %648 = vmatpush.xpose.msra.mxu0 0.0
        %649 = vmatpush.xpose.msra.mxu0 0.0
        %650 = vmatpush.xpose.msra.mxu0 0.0
        %651 = vmatpush.xpose.msra.mxu0 0.0
        %652 = vmatpush.xpose.msra.mxu0 0.0
        %653 = vmatpush.xpose.msra.mxu0 0.0
        %654 = vmatpush.xpose.msra.mxu0 0.0
        %655 = vmatpush.xpose.msra.mxu0 %v638
        %656 = vmatmul.f32.gmra.mxu0 %v636
        %v657 = vpop.f32.mrf.mxu0
        %v658 = vadd.f32 0.0, %v657
        %659 = vdwg.mxu0
        %v660 = vsel %vm396, %v658, -inf
        %661 = vmax.xlane.f32.xlu0 %v660
        %v662 = vpop.xlane.xlu0 %661
        %v663 = vsub.f32 %v658, %v662
        %v664 = vmul.f32 %v663, 1.442695
        %v665 = vpow.pop %v664
        %v666 = vsel %vm396, %v665, 0.0
        %667 = vadd.xlane.f32.xlu0 %v666
        %v668 = vpop.xlane.xlu0 %667
        %v669 = vrcp.pop %v668
        %v670 = vmul.f32 %v668, %v669
        %v671 = vsub.f32 1.0, %v670
        %v672 = vmul.f32 %v669, %v671
        %v673 = vadd.f32 %v669, %v672
        %vm674 = vweird.f32 %v668
        %vm675 = vweird.f32 %v669
        %vm676 = vmor %vm674, %vm675
        %v677 = vsel %vm676, %v669, %v673
        %v678 = vand.u32 2147483647, %v668
        %vm679 = vcmp.eq.f32.partialorder %v678, 8.507059e+37
        %v680 = vand.u32 %v668, 2147483648
        %v681 = vor.u32 1.1754944e-38, %v680
        %v682 = vsel %vm679, %v681, %v677
        %v683 = vmul.f32 %v665, %v682
        %s684 = scalar_lea.vmem %s381, 24 [#allocation12]
        %685 = vst.msk [vmem:[%s684] sm:$0xff] %vm396, %v683
        %686 = vrot.lane.b32.xlu0 %v391, 104
        %v687 = vpop.permute.xlu0 %686
        %v690 = vsel %vm396, %v683, 0
        %692 = vmatpush.msra.mxu0 0.0
        %693 = vmatpush.msra.mxu0 0.0
        %694 = vmatpush.msra.mxu0 0.0
        %695 = vmatpush.msra.mxu0 0.0
        %696 = vmatpush.msra.mxu0 0.0
        %697 = vmatpush.msra.mxu0 0.0
        %698 = vmatpush.msra.mxu0 0.0
        %699 = vmatpush.msra.mxu0 0.0
        %700 = vmatpush.msra.mxu0 0.0
        %701 = vmatpush.msra.mxu0 0.0
        %702 = vmatpush.msra.mxu0 0.0
        %703 = vmatpush.msra.mxu0 0.0
        %704 = vmatpush.msra.mxu0 0.0
        %705 = vmatpush.msra.mxu0 0.0
        %706 = vmatpush.msra.mxu0 0.0
        %707 = vmatpush.msra.mxu0 %v687
        %708 = vmatmul.f32.gmra.mxu0 %v690
        %v709 = vpop.f32.mrf.mxu0
        %v710 = vadd.f32 0.0, %v709
        %711 = vdwg.mxu0
        %713 = vrot.lane.b32.xlu0 %v550, 8
        %v714 = vpop.permute.xlu0 %713
        %717 = vrot.lane.b32.xlu0 %v630, 16
        %v718 = vpop.permute.xlu0 %717
        %721 = vrot.lane.b32.xlu0 %v710, 24
        %v722 = vpop.permute.xlu0 %721
        %v724 = vsel %vm396, %v469, %v714
        %vm725 = vcmask 130048
        %v726 = vsel %vm725, %v724, %v718
        %vm727 = vcmask 195584
        %v728 = vsel %vm727, %v726, %v722
        %v729 = vld [vmem:[#allocation2] sm:$0xff]
        %vm730 = vcmask 261120
        %v732 = vsel %vm730, %v728, 0
        %734 = vmatpush.msra.mxu0 0.0
        %735 = vmatpush.msra.mxu0 0.0
        %736 = vmatpush.msra.mxu0 0.0
        %737 = vmatpush.msra.mxu0 0.0
        %738 = vmatpush.msra.mxu0 0.0
        %739 = vmatpush.msra.mxu0 0.0
        %740 = vmatpush.msra.mxu0 0.0
        %741 = vmatpush.msra.mxu0 0.0
        %742 = vmatpush.msra.mxu0 0.0
        %743 = vmatpush.msra.mxu0 0.0
        %744 = vmatpush.msra.mxu0 0.0
        %745 = vmatpush.msra.mxu0 0.0
        %746 = vmatpush.msra.mxu0 %v395
        %747 = vmatpush.msra.mxu0 %v394
        %748 = vmatpush.msra.mxu0 %v393
        %749 = vmatpush.msra.mxu0 %v392
        %750 = vmatmul.f32.gmra.mxu0 %v732
        %v751 = vpop.f32.mrf.mxu0
        %v752 = vadd.f32 0.0, %v751
        %753 = vdwg.mxu0
        %v754 = vadd.f32 %v729, %v752
        %755 = vst.msk [vmem:[#allocation2] sm:$0xff] %vm730, %v754
        // Predicated region
        $region57: #{tpu_custom_call.1} parent=35 // pred_check
          %p756 = pneg %p383
        $region58: #{tpu_custom_call.1} parent=35 // pred_check_branch
          %758 = sbr.rel (%p756) target = $region60
        $region59: #{tpu_custom_call.1} parent=35 // pred_region
          %v759 = vld [vmem:[#allocation2] sm:$0xff]
          %760 = vst.msk [vmem:[%s374] sm:$0xff] %vm730, %v759
        $region60: #{tpu_custom_call.1} parent=35 // pred_fallthru
          _
        %s761 = sand.u32 %s166, 1
        %s762 = scalar_lea.sflag [#allocation5], %s761
        %s763 = sand.u32 %s166, 1
        %s764 = smul.addr %s763, 8
        %s765 = scalar_lea.vmem [#allocation11], %s764
        %s766 = sand.u32 %s196, 1
        %s767 = scalar_lea.sflag [#allocation13], %s766
        %s768 = sand.u32 %s196, 1
        %s769 = smul.addr %s768, 32
        %s770 = scalar_lea.vmem [#allocation12], %s769
        // Predicated region
        $region61: #{tpu_custom_call.1} parent=35 // pred_check
          %p771 = pneg %p176
        $region62: #{tpu_custom_call.1} parent=35 // pred_check_branch
          %773 = sbr.rel (%p771) target = $region64
        $region63: #{tpu_custom_call.1} parent=35 // pred_region
          %775 = vsyncadd %s762, 0
          %s776 = sadd.s32 %s36, %s35
          %s777 = smul.addr %s776, 8
          %s778 = scalar_lea.hbm %s4, %s777
          %s780 = sshll.u32 %s765, 4
          %s781 = int_to_ptr.vmem [resolvable:$true] %s780
          %s782 = sshll.u32 %s778, 4
          %s783 = int_to_ptr.hbm [resolvable:$true] %s782
          %785 = dma.vmem_to_hbm [thread:$0]  %s781, 128, %s783, %s762
        $region64: #{tpu_custom_call.1} parent=35 // pred_fallthru
          _
        // Predicated region
        $region65: #{tpu_custom_call.1} parent=35 // pred_check
          %p786 = pneg %p206
        $region66: #{tpu_custom_call.1} parent=35 // pred_check_branch
          %788 = sbr.rel (%p786) target = $region68
        $region67: #{tpu_custom_call.1} parent=35 // pred_region
          %s789 = smul.u32 4, %s37
          %791 = vsyncadd %s767, 0
          %s792 = sadd.s32 %s36, %s789
          %s793 = smul.addr %s35, 4
          %s794 = sadd.s32 %s792, %s793
          %s795 = smul.addr %s794, 8
          %s796 = scalar_lea.hbm %s5, %s795
          %s797 = sshll.u32 %s770, 4
          %s798 = int_to_ptr.vmem [resolvable:$true] %s797
          %s799 = sshll.u32 %s796, 4
          %s800 = int_to_ptr.hbm [resolvable:$true] %s799
          %805 = dma.vmem_to_hbm [thread:$0]  %s798, 512, %s800, %s767, 128, 128, 8
        $region68: #{tpu_custom_call.1} parent=35 // pred_fallthru
          _
      $region36: #{tpu_custom_call.1} parent=5 // pred_fallthru
        _
      %p806 = scmp.le.s32.totalorder 2, %s25
      // Predicated region
      $region69: #{tpu_custom_call.1} parent=5 // pred_check
        %p807 = pneg %p806
      $region70: #{tpu_custom_call.1} parent=5 // pred_check_branch
        %809 = sbr.rel (%p807) target = $region72
      $region71: #{tpu_custom_call.1} parent=5 // pred_region
        %s810 = ssub.s32 %s25, 2
        // Predicated region
        $region73: #{tpu_custom_call.1} parent=71 // pred_check
          %p811 = pneg %p182
        $region74: #{tpu_custom_call.1} parent=71 // pred_check_branch
          %813 = sbr.rel (%p811) target = $region76
        $region75: #{tpu_custom_call.1} parent=71 // pred_region
          %s814 = sand.u32 %s167, 1
          %s815 = scalar_lea.sflag [#allocation5], %s814
          %s816 = sand.u32 %s167, 1
          %s817 = smul.addr %s816, 8
          %s818 = scalar_lea.vmem [#allocation11], %s817
          %820 = dma.done %s815, 128
        $region76: #{tpu_custom_call.1} parent=71 // pred_fallthru
          _
        // Predicated region
        $region77: #{tpu_custom_call.1} parent=71 // pred_check
          %p821 = pneg %p212
        $region78: #{tpu_custom_call.1} parent=71 // pred_check_branch
          %823 = sbr.rel (%p821) target = $region80
        $region79: #{tpu_custom_call.1} parent=71 // pred_region
          %s824 = sand.u32 %s197, 1
          %s825 = scalar_lea.sflag [#allocation13], %s824
          %s826 = sand.u32 %s197, 1
          %s827 = smul.addr %s826, 32
          %s828 = scalar_lea.vmem [#allocation12], %s827
          %830 = dma.done %s825, 512
        $region80: #{tpu_custom_call.1} parent=71 // pred_fallthru
          _
      $region72: #{tpu_custom_call.1} parent=5 // pred_fallthru
        _
    $region6: #{tpu_custom_call.1} parent=1 // loop_footer
      %s29 = sadd.s32 1, %s25
    $region7: #{tpu_custom_call.1} parent=1 // loop_footer_branch
      %24 = sbr.rel target = $region3
    $region8: #{tpu_custom_call.1} parent=1 // loop_exit
      _
    %831 = vsyncpa [#allocation4], 1
    %s832 = scalar_lea.sflag [#allocation4], 1
    %833 = vsyncpa %s832, 1
    %834 = vsyncpa [#allocation7], 1
    %s835 = scalar_lea.sflag [#allocation7], 1
    %836 = vsyncpa %s835, 1
    %837 = vsyncpa [#allocation10], 1
    %838 = vsyncpa [#allocation5], 1
    %s839 = scalar_lea.sflag [#allocation5], 1
    %840 = vsyncpa %s839, 1
    %841 = vsyncpa [#allocation13], 1
    %s842 = scalar_lea.sflag [#allocation13], 1
    %843 = vsyncpa %s842, 1

</llo_original>
